<compile_context>
chip_gen: v6e
topology: v6e:2x2x1
jax: 0.10.0
libtpu: 0.0.40
codegen_flags: <defaults>
</compile_context>

<pallas_src>
import functools

import jax
import jax.numpy as jnp
from jax.experimental import pallas as pl
from jax.experimental.pallas import tpu as pltpu


def _conv_gap_bn_kernel(p_ref, w_ref, b_ref, scale_ref, shift_ref, o_ref, *, bt, hw):
    """One grid step: fused conv-as-matmul + bias + ReLU + global-avg-pool + BN for Bt images.

    p_ref:     (bt, hw, kpad)    bf16  packed im2col patches (K zero-padded to 128 lanes)
    w_ref:     (kpad, cout_pad)  bf16  conv weights as a (27->kpad, Cout->cout_pad) matrix
    b_ref:     (1, cout_pad)     f32   conv bias
    scale_ref: (1, cout_pad)     f32   gamma * rsqrt(var+eps) / (H*W)
    shift_ref: (1, cout_pad)     f32   beta - running_mean * gamma * rsqrt(var+eps)
    o_ref:     (1, bt, cout_pad) f32   pooled + BN features (padded output channels)
    """
    kpad = p_ref.shape[-1]
    cout_pad = w_ref.shape[-1]
    # Merge the batch/spatial leading dims (free) -> one big lane-dense matmul on the MXU.
    lhs = p_ref[...].reshape(bt * hw, kpad)
    acc = jnp.dot(lhs, w_ref[...], preferred_element_type=jnp.float32)   # (bt*hw, cout_pad) f32
    s = jnp.maximum(acc + b_ref[...], 0.0)                               # conv bias + ReLU
    pooled = jnp.sum(s.reshape(bt, hw, cout_pad), axis=1)                # per-image spatial sum
    o_ref[0] = (pooled * scale_ref[...] + shift_ref[...]).astype(o_ref.dtype)


def baseline_forward(images_nchw, params, *, images_per_block=None):
    """Eval-mode Baseline forward: returns (B, feat_dim) embedding features."""
    B, C, H, W = images_nchw.shape
    hw = H * W
    eps = 1e-5

    Cout = params['conv_w'].shape[0]
    cout_pad = max(128, ((Cout + 127) // 128) * 128)
    k = 9 * C
    kpad = max(128, ((k + 127) // 128) * 128)            # lane-dense K axis (27 -> 128)

    if images_per_block is None:
        # Keep >=2 grid steps when possible so v7x's two TensorCores both get work;
        # for larger B this also batches several images per step to amortize per-step overhead.
        images_per_block = max(1, B // 2)
    bt = images_per_block
    nblocks = -(-B // bt)
    b_pad = nblocks * bt - B

    # --- preprocess (Baseline.preprocess_image) + im2col patch packing (XLA fuses these) -----
    x = jnp.transpose(images_nchw, (0, 2, 3, 1)).astype(jnp.float32)            # NCHW -> NHWC
    x = (x - params['pixel_mean'].reshape(1, 1, 1, C)) / params['pixel_std'].reshape(1, 1, 1, C)
    xp = jnp.pad(x, ((0, 0), (1, 1), (1, 1), (0, 0)))                            # zero-pad normalized
    patches = jnp.stack([xp[:, i:i + H, j:j + W, :]
                         for i in range(3) for j in range(3)], axis=3)           # (B, H, W, 9, C)
    p = patches.reshape(B, hw, k)
    # Zero-pad batch to a multiple of Bt and K to 128 lanes; cast to bf16 only after full
    # normalization (values O(1)) for good bf16 precision and halved DMA bytes.
    p = jnp.pad(p, ((0, b_pad), (0, 0), (0, kpad - k))).astype(jnp.bfloat16)

    # --- conv weights as one (K, N) matrix, matching the patch (tap-major, channel-minor) order
    w_mat = jnp.transpose(params['conv_w'], (2, 3, 1, 0)).reshape(k, Cout)       # (kh,kw,cin,cout)
    w_mat = jnp.pad(w_mat, ((0, kpad - k), (0, cout_pad - Cout))).astype(jnp.bfloat16)
    bias = jnp.pad(params['conv_b'], (0, cout_pad - Cout)).reshape(1, cout_pad)

    # --- fold GAP's 1/(H*W) and inference BatchNorm into a single scale/shift ----------------
    bn_scale = params['bn_gamma'] * jax.lax.rsqrt(params['bn_rvar'] + eps)
    scale = jnp.pad(bn_scale / hw, (0, cout_pad - Cout)).reshape(1, cout_pad)
    shift = jnp.pad(params['bn_beta'] - params['bn_rmean'] * bn_scale,
                    (0, cout_pad - Cout)).reshape(1, cout_pad)

    kernel = functools.partial(_conv_gap_bn_kernel, bt=bt, hw=hw)

    out = pl.pallas_call(
        kernel,
        out_shape=jax.ShapeDtypeStruct((nblocks, bt, cout_pad), jnp.float32),
        grid=(nblocks,),
        in_specs=[
            pl.BlockSpec((bt, hw, kpad), lambda b: (b, 0, 0)),      # per-step patch LHS
            pl.BlockSpec((kpad, cout_pad), lambda b: (0, 0)),       # weights (resident)
            pl.BlockSpec((1, cout_pad), lambda b: (0, 0)),          # bias
            pl.BlockSpec((1, cout_pad), lambda b: (0, 0)),          # scale
            pl.BlockSpec((1, cout_pad), lambda b: (0, 0)),          # shift
        ],
        out_specs=pl.BlockSpec((1, bt, cout_pad), lambda b: (b, 0, 0)),
        compiler_params=pltpu.CompilerParams(
            dimension_semantics=("parallel",)),
    )(p, w_mat, bias, scale, shift)

    # Strip batch padding and zero-padded output lanes -> (B, Cout) embeddings.
    return out.reshape(nblocks * bt, cout_pad)[:B, :Cout]


def _reference_forward(images_nchw, params):
    """Plain-JAX f32 reference (normalize -> conv3x3 -> ReLU -> GAP -> BN, eval mode)."""
    B, C, H, W = images_nchw.shape
    x = jnp.transpose(images_nchw, (0, 2, 3, 1)).astype(jnp.float32)
    x = (x - params['pixel_mean'].reshape(1, 1, 1, C)) / params['pixel_std'].reshape(1, 1, 1, C)
    xp = jnp.pad(x, ((0, 0), (1, 1), (1, 1), (0, 0)))
    patches = [xp[:, i:i + H, j:j + W, :] for i in range(3) for j in range(3)]
    p = jnp.stack(patches, axis=3).reshape(B, H * W, 9 * C)
    Cout = params['conv_w'].shape[0]
    w_mat = jnp.transpose(params['conv_w'], (2, 3, 1, 0)).reshape(9 * C, Cout)
    s = jnp.einsum('bpk,kn->bpn', p, w_mat) + params['conv_b'].reshape(1, 1, Cout)
    s = jnp.maximum(s, 0.0)
    pooled = jnp.mean(s, axis=1)
    inv = jax.lax.rsqrt(params['bn_rvar'] + 1e-5)
    return (pooled - params['bn_rmean']) * inv * params['bn_gamma'] + params['bn_beta']


if __name__ == "__main__":
    B, C, H, W = 2, 3, 16, 16       # small NCHW input; C=3 matches PIXEL_MEAN/STD length
    FEAT_DIM = 32                   # synthetic backbone output / embedding dim

    key = jax.random.PRNGKey(0)
    k_img, k_w, k_b, k_rm = jax.random.split(key, 4)

    images = jax.random.uniform(k_img, (B, C, H, W), jnp.float32) * 255.0

    params = {
        'pixel_mean': jnp.array([123.675, 116.28, 103.53], jnp.float32),
        'pixel_std': jnp.array([58.395, 57.12, 57.375], jnp.float32),
        'conv_w': jax.random.normal(k_w, (FEAT_DIM, C, 3, 3), jnp.float32) * 0.1,
        'conv_b': jax.random.normal(k_b, (FEAT_DIM,), jnp.float32) * 0.01,
        'bn_gamma': jnp.ones((FEAT_DIM,), jnp.float32),
        'bn_beta': jnp.zeros((FEAT_DIM,), jnp.float32),
        'bn_rmean': jax.random.normal(k_rm, (FEAT_DIM,), jnp.float32) * 0.05,
        'bn_rvar': jnp.ones((FEAT_DIM,), jnp.float32),
    }

    feats = jax.block_until_ready(jax.jit(baseline_forward)(images, params))
    ref = _reference_forward(images, params)

    assert feats.shape == (B, FEAT_DIM)
    # bf16 matmul inputs (f32 accumulation, fully-normalized activations) vs f32 reference.
    assert jnp.allclose(feats, ref, rtol=2e-2, atol=2e-2), "Pallas output mismatch vs reference"
    print("KERNEL_OK")
</pallas_src>

<mosaic_0001>
module attributes {stable_mosaic.version = 11 : i64} {
  func.func @_conv_gap_bn_kernel(%arg0: i32, %arg1: memref<1x256x128xbf16, #tpu.memory_space<vmem>>, %arg2: memref<128x128xbf16, #tpu.memory_space<vmem>>, %arg3: memref<1x128xf32, #tpu.memory_space<vmem>>, %arg4: memref<1x128xf32, #tpu.memory_space<vmem>>, %arg5: memref<1x128xf32, #tpu.memory_space<vmem>>, %arg6: memref<1x1x128xf32, #tpu.memory_space<vmem>>) attributes {dimension_semantics = [#tpu.dimension_semantics<parallel>], iteration_bounds = array<i64: 2>, scalar_prefetch = 0 : i64, scratch_operands = 0 : i64, tpu.core_type = #tpu.core_type<tc>, window_params = [{transform_indices = @transform_0, window_bounds = array<i64: 1, 256, 128>}, {pipeline_mode = #tpu.pipeline_mode<synchronous>, transform_indices = @transform_1, window_bounds = array<i64: 128, 128>}, {pipeline_mode = #tpu.pipeline_mode<synchronous>, transform_indices = @transform_2, window_bounds = array<i64: 1, 128>}, {pipeline_mode = #tpu.pipeline_mode<synchronous>, transform_indices = @transform_3, window_bounds = array<i64: 1, 128>}, {pipeline_mode = #tpu.pipeline_mode<synchronous>, transform_indices = @transform_4, window_bounds = array<i64: 1, 128>}, {transform_indices = @transform_5, window_bounds = array<i64: 1, 1, 128>}]} {
    %c0 = arith.constant 0 : index
    %c0_0 = arith.constant 0 : index
    %c0_1 = arith.constant 0 : index
    %0 = vector.load %arg1[%c0, %c0_0, %c0_1] : memref<1x256x128xbf16, #tpu.memory_space<vmem>>, vector<1x256x128xbf16>
    %1 = vector.shape_cast %0 : vector<1x256x128xbf16> to vector<256x128xbf16>
    %c0_2 = arith.constant 0 : index
    %c0_3 = arith.constant 0 : index
    %2 = vector.load %arg2[%c0_2, %c0_3] : memref<128x128xbf16, #tpu.memory_space<vmem>>, vector<128x128xbf16>
    %cst = arith.constant dense<0.000000e+00> : vector<256x128xf32>
    %3 = tpu.matmul %1, %2, %cst {dimension_numbers = #tpu.dot_dimension_numbers<[1], [0], [0], [1], [0, 0, 1, 1], [], []>} : vector<256x128xbf16>, vector<128x128xbf16>, vector<256x128xf32> -> vector<256x128xf32>
    %c0_4 = arith.constant 0 : index
    %c0_5 = arith.constant 0 : index
    %4 = vector.load %arg3[%c0_4, %c0_5] : memref<1x128xf32, #tpu.memory_space<vmem>>, vector<1x128xf32>
    %5 = vector.broadcast %4 : vector<1x128xf32> to vector<256x128xf32>
    %6 = arith.addf %3, %5 : vector<256x128xf32>
    %cst_6 = arith.constant 0.000000e+00 : f32
    %7 = vector.broadcast %cst_6 : f32 to vector<256x128xf32>
    %8 = arith.maximumf %6, %7 : vector<256x128xf32>
    %9 = vector.shape_cast %8 : vector<256x128xf32> to vector<1x256x128xf32>
    %cst_7 = arith.constant dense<0.000000e+00> : vector<1x128xf32>
    %10 = vector.multi_reduction <add>, %9, %cst_7 [1] : vector<1x256x128xf32> to vector<1x128xf32>
    %c0_8 = arith.constant 0 : index
    %c0_9 = arith.constant 0 : index
    %11 = vector.load %arg4[%c0_8, %c0_9] : memref<1x128xf32, #tpu.memory_space<vmem>>, vector<1x128xf32>
    %12 = arith.mulf %10, %11 : vector<1x128xf32>
    %c0_10 = arith.constant 0 : index
    %c0_11 = arith.constant 0 : index
    %13 = vector.load %arg5[%c0_10, %c0_11] : memref<1x128xf32, #tpu.memory_space<vmem>>, vector<1x128xf32>
    %14 = arith.addf %12, %13 : vector<1x128xf32>
    %c0_12 = arith.constant 0 : index
    %c0_13 = arith.constant 0 : index
    %c0_14 = arith.constant 0 : index
    %15 = vector.load %arg6[%c0_12, %c0_13, %c0_14] : memref<1x1x128xf32, #tpu.memory_space<vmem>>, vector<1x1x128xf32>
    %16 = vector.shape_cast %15 : vector<1x1x128xf32> to vector<1x128xf32>
    %17 = vector.shape_cast %14 : vector<1x128xf32> to vector<1x1x128xf32>
    tpu.vector_store %arg6[%c0_12, %c0_13, %c0_14], %17 {strides = array<i32>} : memref<1x1x128xf32, #tpu.memory_space<vmem>>, vector<1x1x128xf32>,
    return
  }
  func.func @transform_0(%arg0: i32) -> (i32, i32, i32) {
    %c0_i32 = arith.constant 0 : i32
    %c0_i32_0 = arith.constant 0 : i32
    %c0_i32_1 = arith.constant 0 : i32
    return %arg0, %c0_i32, %c0_i32_0 : i32, i32, i32
  }
  func.func @transform_1(%arg0: i32) -> (i32, i32) {
    %c0_i32 = arith.constant 0 : i32
    %c0_i32_0 = arith.constant 0 : i32
    %c0_i32_1 = arith.constant 0 : i32
    return %c0_i32, %c0_i32_0 : i32, i32
  }
  func.func @transform_2(%arg0: i32) -> (i32, i32) {
    %c0_i32 = arith.constant 0 : i32
    %c0_i32_0 = arith.constant 0 : i32
    %c0_i32_1 = arith.constant 0 : i32
    return %c0_i32, %c0_i32_0 : i32, i32
  }
  func.func @transform_3(%arg0: i32) -> (i32, i32) {
    %c0_i32 = arith.constant 0 : i32
    %c0_i32_0 = arith.constant 0 : i32
    %c0_i32_1 = arith.constant 0 : i32
    return %c0_i32, %c0_i32_0 : i32, i32
  }
  func.func @transform_4(%arg0: i32) -> (i32, i32) {
    %c0_i32 = arith.constant 0 : i32
    %c0_i32_0 = arith.constant 0 : i32
    %c0_i32_1 = arith.constant 0 : i32
    return %c0_i32, %c0_i32_0 : i32, i32
  }
  func.func @transform_5(%arg0: i32) -> (i32, i32, i32) {
    %c0_i32 = arith.constant 0 : i32
    %c0_i32_0 = arith.constant 0 : i32
    %c0_i32_1 = arith.constant 0 : i32
    return %arg0, %c0_i32, %c0_i32_0 : i32, i32, i32
  }
}

</mosaic_0001>

<llo_original>
// kernel: baseline_forward.1
$region0: #{baseline_forward.1}
  #allocation0 [shape = 'u32[]', space=smem, size = 0x4, offset = 0x4, fixed_abs, tag = 'smem constant byte address 0x4 - core index']
  #allocation1 [shape = 'u32[144,128]{1,0:T(1,128)}', space=vmem, size = 0x12000, scoped, tag = 'internal scratch']
  %s0 = inlined_call_operand.vmem [shape: bf16[2,256,128], index: 0, kind: input, shape index: {}]
  %s1 = inlined_call_operand.vmem [shape: bf16[128,128], index: 1, kind: input, shape index: {}]
  %s2 = inlined_call_operand.vmem [shape: f32[1,128], index: 2, kind: input, shape index: {}]
  %s3 = inlined_call_operand.vmem [shape: f32[1,128], index: 3, kind: input, shape index: {}]
  %s4 = inlined_call_operand.vmem [shape: f32[1,128], index: 4, kind: input, shape index: {}]
  %s5 = inlined_call_operand.hbm [shape: f32[2,1,128], index: 5, kind: output, shape index: {}]
  %s6 = sld [smem:[#allocation0]]
  $region53: #{baseline_forward.1} parent=0
    _
  %s8 = ssub.s32 1, %s6
  %s9 = scalar_select 0, %s8, %s6
  $region1: #{baseline_forward.1} parent=0
    #allocation2 [shape = 'u8[1024]{0}', space=vmem, size = 0x400, scoped, tag = 'output window, operand 0']
    #allocation3 [shape = 's32[2]{0}', space=sflag, size = 0x8, scoped, tag = 'scoped memory for baseline_forward.1']
    %10 = vsyncpa [#allocation3], 0
    %s11 = scalar_lea.sflag [#allocation3], 1
    %12 = vsyncpa %s11, 0
    loop: start=0, step=1, limit=4
    $region2: #{baseline_forward.1} parent=1 // loop_pre_header
      _
    $region3: #{baseline_forward.1} parent=1 // loop_header
      %s14 = sphi 0, %s18
      %p15 = scmp.ge.s32.totalorder %s14, 4
      %s24 = sphi 0, %s26
      %s27 = sphi 0, %s24
      %s28 = sphi 0, %s27
      %s44 = sphi 0, %s28
      %s48 = sphi 0, %s48
      %s50 = sphi 0, %s48
      %s51 = sphi 0, %s50
      %s65 = sphi 0, %s51
      %s69 = sphi 0, %s69
      %s71 = sphi 0, %s69
      %s72 = sphi 0, %s71
      %s86 = sphi 0, %s72
      %s90 = sphi 0, %s90
      %s92 = sphi 0, %s90
      %s93 = sphi 0, %s92
      %s107 = sphi 0, %s93
      %s111 = sphi 0, %s111
      %s113 = sphi 0, %s111
      %s114 = sphi 0, %s113
      %s128 = sphi 0, %s114
      %s134 = sphi 0, %s136
      %s137 = sphi 0, %s134
      %s138 = sphi 0, %s137
      %s154 = sphi 0, %s138
    $region4: #{baseline_forward.1} parent=1 // loop_header_branch
      %17 = sbr.rel (%p15) target = $region8
    $region5: #{baseline_forward.1} parent=1 // loop_body
      %s19 = ssub.s32 %s14, 1
      %s20 = ssub.s32 %s14, 2
      %s21 = sadd.s32 %s14, 1
      %s22 = ssub.s32 %s14, %s21
      %p23 = scmp.eq.s32.totalorder %s22, 0
      %s25 = sadd.s32 %s24, 1
      %s26 = scalar_select %p23, %s24, %s25
      %p29 = pneg %p23
      %p30 = scmp.eq.s32.totalorder %s14, 1
      %p31 = por %p29, %p30
      %p32 = scmp.ne.s32.totalorder %s24, %s27
      %p33 = scmp.eq.s32.totalorder %s14, 0
      %p34 = por %p32, %p33
      %p35 = scmp.ne.s32.totalorder %s24, %s27
      %p36 = scmp.eq.s32.totalorder %s19, 1
      %p37 = por %p35, %p36
      %p38 = scmp.ne.s32.totalorder %s27, %s28
      %p39 = scmp.eq.s32.totalorder %s19, 0
      %p40 = por %p38, %p39
      %p41 = scmp.ne.s32.totalorder %s27, %s28
      %p42 = scmp.eq.s32.totalorder %s20, 1
      %p43 = por %p41, %p42
      %p45 = scmp.ne.s32.totalorder %s28, %s44
      %p46 = scmp.eq.s32.totalorder %s20, 0
      %p47 = por %p45, %p46
      %s49 = sadd.s32 %s48, 1
      %p52 = scmp.eq.s32.totalorder %s14, 1
      %p53 = scmp.ne.s32.totalorder %s48, %s50
      %p54 = scmp.eq.s32.totalorder %s14, 0
      %p55 = por %p53, %p54
      %p56 = scmp.ne.s32.totalorder %s48, %s50
      %p57 = scmp.eq.s32.totalorder %s19, 1
      %p58 = por %p56, %p57
      %p59 = scmp.ne.s32.totalorder %s50, %s51
      %p60 = scmp.eq.s32.totalorder %s19, 0
      %p61 = por %p59, %p60
      %p62 = scmp.ne.s32.totalorder %s50, %s51
      %p63 = scmp.eq.s32.totalorder %s20, 1
      %p64 = por %p62, %p63
      %p66 = scmp.ne.s32.totalorder %s51, %s65
      %p67 = scmp.eq.s32.totalorder %s20, 0
      %p68 = por %p66, %p67
      %s70 = sadd.s32 %s69, 1
      %p73 = scmp.eq.s32.totalorder %s14, 1
      %p74 = scmp.ne.s32.totalorder %s69, %s71
      %p75 = scmp.eq.s32.totalorder %s14, 0
      %p76 = por %p74, %p75
      %p77 = scmp.ne.s32.totalorder %s69, %s71
      %p78 = scmp.eq.s32.totalorder %s19, 1
      %p79 = por %p77, %p78
      %p80 = scmp.ne.s32.totalorder %s71, %s72
      %p81 = scmp.eq.s32.totalorder %s19, 0
      %p82 = por %p80, %p81
      %p83 = scmp.ne.s32.totalorder %s71, %s72
      %p84 = scmp.eq.s32.totalorder %s20, 1
      %p85 = por %p83, %p84
      %p87 = scmp.ne.s32.totalorder %s72, %s86
      %p88 = scmp.eq.s32.totalorder %s20, 0
      %p89 = por %p87, %p88
      %s91 = sadd.s32 %s90, 1
      %p94 = scmp.eq.s32.totalorder %s14, 1
      %p95 = scmp.ne.s32.totalorder %s90, %s92
      %p96 = scmp.eq.s32.totalorder %s14, 0
      %p97 = por %p95, %p96
      %p98 = scmp.ne.s32.totalorder %s90, %s92
      %p99 = scmp.eq.s32.totalorder %s19, 1
      %p100 = por %p98, %p99
      %p101 = scmp.ne.s32.totalorder %s92, %s93
      %p102 = scmp.eq.s32.totalorder %s19, 0
      %p103 = por %p101, %p102
      %p104 = scmp.ne.s32.totalorder %s92, %s93
      %p105 = scmp.eq.s32.totalorder %s20, 1
      %p106 = por %p104, %p105
      %p108 = scmp.ne.s32.totalorder %s93, %s107
      %p109 = scmp.eq.s32.totalorder %s20, 0
      %p110 = por %p108, %p109
      %s112 = sadd.s32 %s111, 1
      %p115 = scmp.eq.s32.totalorder %s14, 1
      %p116 = scmp.ne.s32.totalorder %s111, %s113
      %p117 = scmp.eq.s32.totalorder %s14, 0
      %p118 = por %p116, %p117
      %p119 = scmp.ne.s32.totalorder %s111, %s113
      %p120 = scmp.eq.s32.totalorder %s19, 1
      %p121 = por %p119, %p120
      %p122 = scmp.ne.s32.totalorder %s113, %s114
      %p123 = scmp.eq.s32.totalorder %s19, 0
      %p124 = por %p122, %p123
      %p125 = scmp.ne.s32.totalorder %s113, %s114
      %p126 = scmp.eq.s32.totalorder %s20, 1
      %p127 = por %p125, %p126
      %p129 = scmp.ne.s32.totalorder %s114, %s128
      %p130 = scmp.eq.s32.totalorder %s20, 0
      %p131 = por %p129, %p130
      %s132 = ssub.s32 %s14, %s21
      %p133 = scmp.eq.s32.totalorder %s132, 0
      %s135 = sadd.s32 %s134, 1
      %s136 = scalar_select %p133, %s134, %s135
      %p139 = pneg %p133
      %p140 = scmp.eq.s32.totalorder %s14, 1
      %p141 = por %p139, %p140
      %p142 = scmp.ne.s32.totalorder %s134, %s137
      %p143 = scmp.eq.s32.totalorder %s14, 0
      %p144 = por %p142, %p143
      %p145 = scmp.ne.s32.totalorder %s134, %s137
      %p146 = scmp.eq.s32.totalorder %s19, 1
      %p147 = por %p145, %p146
      %p148 = scmp.ne.s32.totalorder %s137, %s138
      %p149 = scmp.eq.s32.totalorder %s19, 0
      %p150 = por %p148, %p149
      %p151 = scmp.ne.s32.totalorder %s137, %s138
      %p152 = scmp.eq.s32.totalorder %s20, 1
      %p153 = por %p151, %p152
      %p155 = scmp.ne.s32.totalorder %s138, %s154
      %p156 = scmp.eq.s32.totalorder %s20, 0
      %p157 = por %p155, %p156
      %p158 = scmp.le.s32.totalorder 1, %s14
      %p159 = scmp.lt.s32.totalorder %s14, 3
      %p160 = pnand %p158, %p159
      %p161 = pneg %p160
      // Predicated region
      $region9: #{baseline_forward.1} parent=5 // pred_check
        _
      $region10: #{baseline_forward.1} parent=5 // pred_check_branch
        %163 = sbr.rel (%p160) target = $region12
      $region11: #{baseline_forward.1} parent=5 // pred_region
        %s164 = ssub.s32 %s14, 1
        // Predicated region
        $region13: #{baseline_forward.1} parent=11 // pred_check
          %p165 = pneg %p61
        $region14: #{baseline_forward.1} parent=11 // pred_check_branch
          %167 = sbr.rel (%p165) target = $region16
        $region15: #{baseline_forward.1} parent=11 // pred_region
          _
        $region16: #{baseline_forward.1} parent=11 // pred_fallthru
          _
        // Predicated region
        $region17: #{baseline_forward.1} parent=11 // pred_check
          %p168 = pneg %p82
        $region18: #{baseline_forward.1} parent=11 // pred_check_branch
          %170 = sbr.rel (%p168) target = $region20
        $region19: #{baseline_forward.1} parent=11 // pred_region
          _
        $region20: #{baseline_forward.1} parent=11 // pred_fallthru
          _
        // Predicated region
        $region21: #{baseline_forward.1} parent=11 // pred_check
          %p171 = pneg %p103
        $region22: #{baseline_forward.1} parent=11 // pred_check_branch
          %173 = sbr.rel (%p171) target = $region24
        $region23: #{baseline_forward.1} parent=11 // pred_region
          _
        $region24: #{baseline_forward.1} parent=11 // pred_fallthru
          _
        // Predicated region
        $region25: #{baseline_forward.1} parent=11 // pred_check
          %p174 = pneg %p124
        $region26: #{baseline_forward.1} parent=11 // pred_check_branch
          %176 = sbr.rel (%p174) target = $region28
        $region27: #{baseline_forward.1} parent=11 // pred_region
          _
        $region28: #{baseline_forward.1} parent=11 // pred_fallthru
          _
      $region12: #{baseline_forward.1} parent=5 // pred_fallthru
        _
      %p177 = scmp.lt.s32.totalorder %s14, 2
      // Predicated region
      $region29: #{baseline_forward.1} parent=5 // pred_check
        %p178 = pneg %p177
      $region30: #{baseline_forward.1} parent=5 // pred_check_branch
        %180 = sbr.rel (%p178) target = $region32
      $region31: #{baseline_forward.1} parent=5 // pred_region
        // Predicated region
        $region33: #{baseline_forward.1} parent=31 // pred_check
          %p181 = pneg %p34
        $region34: #{baseline_forward.1} parent=31 // pred_check_branch
          %183 = sbr.rel (%p181) target = $region36
        $region35: #{baseline_forward.1} parent=31 // pred_region
          %p184 = scmp.lt.s32.totalorder %s14, 1
          %s185 = scalar_select %p184, %s14, 1
          %s186 = smul.addr %s185, 32
          %s187 = smul.addr %s186, 4
          %s188 = scalar_lea.vmem %s0, %s187
        $region36: #{baseline_forward.1} parent=31 // pred_fallthru
          _
      $region32: #{baseline_forward.1} parent=5 // pred_fallthru
        _
      %p189 = scmp.le.s32.totalorder 1, %s14
      %p190 = scmp.lt.s32.totalorder %s14, 3
      %p191 = pnand %p189, %p190
      %p192 = pneg %p191
      // Predicated region
      $region37: #{baseline_forward.1} parent=5 // pred_check
        _
      $region38: #{baseline_forward.1} parent=5 // pred_check_branch
        %194 = sbr.rel (%p191) target = $region40
      $region39: #{baseline_forward.1} parent=5 // pred_region
        %s195 = ssub.s32 %s14, 1
        %p196 = scmp.lt.s32.totalorder %s19, 1
        %s197 = scalar_select %p196, %s19, 1
        %s198 = smul.addr %s197, 32
        %s199 = smul.addr %s198, 4
        %s200 = scalar_lea.vmem %s0, %s199
        %p201 = pneg %p40
        %p202 = pneg %p37
        %p203 = pneg %p61
        %p204 = pneg %p58
        %p205 = pneg %p82
        %p206 = pneg %p79
        %p207 = pneg %p103
        %p208 = pneg %p100
        %p209 = pneg %p124
        %p210 = pneg %p121
        %p211 = pneg %p150
        %p212 = pneg %p147
        %s213 = sand.u32 %s137, 1
        %s214 = scalar_lea.sflag [#allocation3], %s213
        %s215 = sand.u32 %s137, 1
        %s216 = scalar_lea.vmem [#allocation2], %s215
        %p217 = scmp.lt.s32.totalorder %s19, 1
        %s218 = scalar_select %p217, %s19, 1
        %s219 = smul.addr %s218, 32
        %s220 = smul.addr %s219, 4
        %s221 = scalar_lea.vmem %s0, %s220
        %v223 = vld [vmem:[%s221] sm:$0xf]
        %v224 = vld [vmem:[%s221 + $0x4] sm:$0xf]
        %v225 = vld [vmem:[%s221 + $0x8] sm:$0xf]
        %v226 = vld [vmem:[%s221 + $0xc] sm:$0xf]
        %v227 = vld [vmem:[%s221 + $0x10] sm:$0xf]
        %v228 = vld [vmem:[%s221 + $0x14] sm:$0xf]
        %v229 = vld [vmem:[%s221 + $0x18] sm:$0xf]
        %v230 = vld [vmem:[%s221 + $0x1c] sm:$0xf]
        %v231 = vld [vmem:[%s221 + $0x20] sm:$0xf]
        %v232 = vld [vmem:[%s221 + $0x24] sm:$0xf]
        %v233 = vld [vmem:[%s221 + $0x28] sm:$0xf]
        %v234 = vld [vmem:[%s221 + $0x2c] sm:$0xf]
        %v235 = vld [vmem:[%s221 + $0x30] sm:$0xf]
        %v236 = vld [vmem:[%s221 + $0x34] sm:$0xf]
        %v237 = vld [vmem:[%s221 + $0x38] sm:$0xf]
        %v238 = vld [vmem:[%s221 + $0x3c] sm:$0xf]
        %v239 = vld [vmem:[%s221 + $0x40] sm:$0xf]
        %v240 = vld [vmem:[%s221 + $0x44] sm:$0xf]
        %v241 = vld [vmem:[%s221 + $0x48] sm:$0xf]
        %v242 = vld [vmem:[%s221 + $0x4c] sm:$0xf]
        %v243 = vld [vmem:[%s221 + $0x50] sm:$0xf]
        %v244 = vld [vmem:[%s221 + $0x54] sm:$0xf]
        %v245 = vld [vmem:[%s221 + $0x58] sm:$0xf]
        %v246 = vld [vmem:[%s221 + $0x5c] sm:$0xf]
        %v247 = vld [vmem:[%s221 + $0x60] sm:$0xf]
        %v248 = vld [vmem:[%s221 + $0x64] sm:$0xf]
        %v249 = vld [vmem:[%s221 + $0x68] sm:$0xf]
        %v250 = vld [vmem:[%s221 + $0x6c] sm:$0xf]
        %v251 = vld [vmem:[%s221 + $0x70] sm:$0xf]
        %v252 = vld [vmem:[%s221 + $0x74] sm:$0xf]
        %v253 = vld [vmem:[%s221 + $0x78] sm:$0xf]
        %v254 = vld [vmem:[%s221 + $0x7c] sm:$0xf]
        %v255 = vld [vmem:[%s1] sm:$0xf]
        %v256 = vld [vmem:[%s1 + $0x4] sm:$0xf]
        %v257 = vld [vmem:[%s1 + $0x8] sm:$0xf]
        %v258 = vld [vmem:[%s1 + $0xc] sm:$0xf]
        %v259 = vld [vmem:[%s1 + $0x10] sm:$0xf]
        %v260 = vld [vmem:[%s1 + $0x14] sm:$0xf]
        %v261 = vld [vmem:[%s1 + $0x18] sm:$0xf]
        %v262 = vld [vmem:[%s1 + $0x1c] sm:$0xf]
        %v263 = vld [vmem:[%s1 + $0x20] sm:$0xf]
        %v264 = vld [vmem:[%s1 + $0x24] sm:$0xf]
        %v265 = vld [vmem:[%s1 + $0x28] sm:$0xf]
        %v266 = vld [vmem:[%s1 + $0x2c] sm:$0xf]
        %v267 = vld [vmem:[%s1 + $0x30] sm:$0xf]
        %v268 = vld [vmem:[%s1 + $0x34] sm:$0xf]
        %v269 = vld [vmem:[%s1 + $0x38] sm:$0xf]
        %v270 = vld [vmem:[%s1 + $0x3c] sm:$0xf]
        %v271 = vld [vmem:[%s2] sm:$0x1]
        %v273 = vlaneseq
        %v274 = vshrl.u32 %v273, 7
        %v275 = vsub.s32 0, %v274
        %v276 = vrot.slane %v271, %v275
        %v310 = vunpack.c.l.b16 %v223
        %v311 = vunpack.c.l.b16 %v224
        %v312 = vunpack.c.l.b16 %v225
        %v313 = vunpack.c.l.b16 %v226
        %v314 = vunpack.c.l.b16 %v227
        %v315 = vunpack.c.l.b16 %v228
        %v316 = vunpack.c.l.b16 %v229
        %v317 = vunpack.c.l.b16 %v230
        %v318 = vunpack.c.l.b16 %v231
        %v319 = vunpack.c.l.b16 %v232
        %v320 = vunpack.c.l.b16 %v233
        %v321 = vunpack.c.l.b16 %v234
        %v322 = vunpack.c.l.b16 %v235
        %v323 = vunpack.c.l.b16 %v236
        %v324 = vunpack.c.l.b16 %v237
        %v325 = vunpack.c.l.b16 %v238
        %v326 = vunpack.c.l.b16 %v239
        %v327 = vunpack.c.l.b16 %v240
        %v328 = vunpack.c.l.b16 %v241
        %v329 = vunpack.c.l.b16 %v242
        %v330 = vunpack.c.l.b16 %v243
        %v331 = vunpack.c.l.b16 %v244
        %v332 = vunpack.c.l.b16 %v245
        %v333 = vunpack.c.l.b16 %v246
        %v334 = vunpack.c.l.b16 %v247
        %v335 = vunpack.c.l.b16 %v248
        %v336 = vunpack.c.l.b16 %v249
        %v337 = vunpack.c.l.b16 %v250
        %v338 = vunpack.c.l.b16 %v251
        %v339 = vunpack.c.l.b16 %v252
        %v340 = vunpack.c.l.b16 %v253
        %v341 = vunpack.c.l.b16 %v254
        %v342 = vpack.c.b16 %v311, %v310
        %v343 = vpack.c.b16 %v313, %v312
        %v344 = vpack.c.b16 %v315, %v314
        %v345 = vpack.c.b16 %v317, %v316
        %v346 = vpack.c.b16 %v319, %v318
        %v347 = vpack.c.b16 %v321, %v320
        %v348 = vpack.c.b16 %v323, %v322
        %v349 = vpack.c.b16 %v325, %v324
        %v350 = vpack.c.b16 %v327, %v326
        %v351 = vpack.c.b16 %v329, %v328
        %v352 = vpack.c.b16 %v331, %v330
        %v353 = vpack.c.b16 %v333, %v332
        %v354 = vpack.c.b16 %v335, %v334
        %v355 = vpack.c.b16 %v337, %v336
        %v356 = vpack.c.b16 %v339, %v338
        %v357 = vpack.c.b16 %v341, %v340
        %v390 = vunpack.c.l.b16 %v255
        %v391 = vunpack.c.l.b16 %v256
        %v392 = vunpack.c.l.b16 %v257
        %v393 = vunpack.c.l.b16 %v258
        %v394 = vunpack.c.l.b16 %v259
        %v395 = vunpack.c.l.b16 %v260
        %v396 = vunpack.c.l.b16 %v261
        %v397 = vunpack.c.l.b16 %v262
        %v398 = vunpack.c.l.b16 %v263
        %v399 = vunpack.c.l.b16 %v264
        %v400 = vunpack.c.l.b16 %v265
        %v401 = vunpack.c.l.b16 %v266
        %v402 = vunpack.c.l.b16 %v267
        %v403 = vunpack.c.l.b16 %v268
        %v404 = vunpack.c.l.b16 %v269
        %v405 = vunpack.c.l.b16 %v270
        %v406 = vpack.c.b16 %v391, %v390
        %v407 = vpack.c.b16 %v393, %v392
        %v408 = vpack.c.b16 %v395, %v394
        %v409 = vpack.c.b16 %v397, %v396
        %v410 = vpack.c.b16 %v399, %v398
        %v411 = vpack.c.b16 %v401, %v400
        %v412 = vpack.c.b16 %v403, %v402
        %v413 = vpack.c.b16 %v405, %v404
        %422 = vmatprep.subr.bf16.mxu0 0
        %423 = vmatpush1.bf16.msra.mxu0 %v413
        %424 = vmatprep.subr.bf16.mxu0 0
        %425 = vmatpush1.bf16.msra.mxu0 %v412
        %426 = vmatprep.subr.bf16.mxu0 0
        %427 = vmatpush1.bf16.msra.mxu0 %v411
        %428 = vmatprep.subr.bf16.mxu0 0
        %429 = vmatpush1.bf16.msra.mxu0 %v410
        %430 = vmatprep.subr.bf16.mxu0 0
        %431 = vmatpush1.bf16.msra.mxu0 %v409
        %432 = vmatprep.subr.bf16.mxu0 0
        %433 = vmatpush1.bf16.msra.mxu0 %v408
        %434 = vmatprep.subr.bf16.mxu0 0
        %435 = vmatpush1.bf16.msra.mxu0 %v407
        %436 = vmatprep.subr.bf16.mxu0 0
        %437 = vmatpush1.bf16.msra.mxu0 %v406
        %438 = vmatprep.subr.bf16.mxu0 0
        %439 = vmatpush2.bf16.msra.mxu0 0
        %440 = vmatprep.subr.bf16.mxu0 0
        %441 = vmatpush2.bf16.msra.mxu0 0
        %442 = vmatprep.subr.bf16.mxu0 0
        %443 = vmatpush2.bf16.msra.mxu0 0
        %444 = vmatprep.subr.bf16.mxu0 0
        %445 = vmatpush2.bf16.msra.mxu0 0
        %446 = vmatprep.subr.bf16.mxu0 0
        %447 = vmatpush2.bf16.msra.mxu0 0
        %448 = vmatprep.subr.bf16.mxu0 0
        %449 = vmatpush2.bf16.msra.mxu0 0
        %450 = vmatprep.subr.bf16.mxu0 0
        %451 = vmatpush2.bf16.msra.mxu0 0
        %452 = vmatprep.subr.bf16.mxu0 0
        %453 = vmatpush2.bf16.msra.mxu0 0
        %454 = vmatprep.mubr.bf16.mxu0 0
        %455 = vmatmul.mubr.bf16.gmra.mxu0 %v342
        %v456 = vpop.f32.mrf.mxu0
        %v457 = vadd.f32 %v276, %v456
        %v458 = vpop.f32.mrf.mxu0
        %v459 = vpop.f32.mrf.mxu0
        %v460 = vadd.f32 %v276, %v459
        %v461 = vpop.f32.mrf.mxu0
        %462 = vmatprep.mubr.bf16.mxu0 0
        %463 = vmatmul.mubr.bf16.gmra.mxu0 %v343
        %v464 = vpop.f32.mrf.mxu0
        %v465 = vadd.f32 %v276, %v464
        %v466 = vpop.f32.mrf.mxu0
        %v467 = vpop.f32.mrf.mxu0
        %v468 = vadd.f32 %v276, %v467
        %v469 = vpop.f32.mrf.mxu0
        %470 = vmatprep.mubr.bf16.mxu0 0
        %471 = vmatmul.mubr.bf16.gmra.mxu0 %v344
        %v472 = vpop.f32.mrf.mxu0
        %v473 = vadd.f32 %v276, %v472
        %v474 = vpop.f32.mrf.mxu0
        %v475 = vpop.f32.mrf.mxu0
        %v476 = vadd.f32 %v276, %v475
        %v477 = vpop.f32.mrf.mxu0
        %478 = vmatprep.mubr.bf16.mxu0 0
        %479 = vmatmul.mubr.bf16.gmra.mxu0 %v345
        %v480 = vpop.f32.mrf.mxu0
        %v481 = vadd.f32 %v276, %v480
        %v482 = vpop.f32.mrf.mxu0
        %v483 = vpop.f32.mrf.mxu0
        %v484 = vadd.f32 %v276, %v483
        %v485 = vpop.f32.mrf.mxu0
        %486 = vmatprep.mubr.bf16.mxu0 0
        %487 = vmatmul.mubr.bf16.gmra.mxu0 %v346
        %v488 = vpop.f32.mrf.mxu0
        %v489 = vadd.f32 %v276, %v488
        %v490 = vpop.f32.mrf.mxu0
        %v491 = vpop.f32.mrf.mxu0
        %v492 = vadd.f32 %v276, %v491
        %v493 = vpop.f32.mrf.mxu0
        %494 = vmatprep.mubr.bf16.mxu0 0
        %495 = vmatmul.mubr.bf16.gmra.mxu0 %v347
        %v496 = vpop.f32.mrf.mxu0
        %v497 = vadd.f32 %v276, %v496
        %v498 = vpop.f32.mrf.mxu0
        %v499 = vpop.f32.mrf.mxu0
        %v500 = vadd.f32 %v276, %v499
        %v501 = vpop.f32.mrf.mxu0
        %502 = vmatprep.mubr.bf16.mxu0 0
        %503 = vmatmul.mubr.bf16.gmra.mxu0 %v348
        %v504 = vpop.f32.mrf.mxu0
        %v505 = vadd.f32 %v276, %v504
        %v506 = vpop.f32.mrf.mxu0
        %v507 = vpop.f32.mrf.mxu0
        %v508 = vadd.f32 %v276, %v507
        %v509 = vpop.f32.mrf.mxu0
        %510 = vmatprep.mubr.bf16.mxu0 0
        %511 = vmatmul.mubr.bf16.gmra.mxu0 %v349
        %v512 = vpop.f32.mrf.mxu0
        %v513 = vadd.f32 %v276, %v512
        %v514 = vpop.f32.mrf.mxu0
        %v515 = vpop.f32.mrf.mxu0
        %v516 = vadd.f32 %v276, %v515
        %v517 = vpop.f32.mrf.mxu0
        %518 = vmatprep.mubr.bf16.mxu0 0
        %519 = vmatmul.mubr.bf16.gmra.mxu0 %v350
        %v520 = vpop.f32.mrf.mxu0
        %v521 = vadd.f32 %v276, %v520
        %v522 = vpop.f32.mrf.mxu0
        %v523 = vpop.f32.mrf.mxu0
        %v524 = vadd.f32 %v276, %v523
        %v525 = vpop.f32.mrf.mxu0
        %526 = vmatprep.mubr.bf16.mxu0 0
        %527 = vmatmul.mubr.bf16.gmra.mxu0 %v351
        %v528 = vpop.f32.mrf.mxu0
        %v529 = vadd.f32 %v276, %v528
        %v530 = vpop.f32.mrf.mxu0
        %v531 = vpop.f32.mrf.mxu0
        %v532 = vadd.f32 %v276, %v531
        %v533 = vpop.f32.mrf.mxu0
        %534 = vmatprep.mubr.bf16.mxu0 0
        %535 = vmatmul.mubr.bf16.gmra.mxu0 %v352
        %v536 = vpop.f32.mrf.mxu0
        %v537 = vadd.f32 %v276, %v536
        %v538 = vpop.f32.mrf.mxu0
        %v539 = vpop.f32.mrf.mxu0
        %v540 = vadd.f32 %v276, %v539
        %v541 = vpop.f32.mrf.mxu0
        %542 = vmatprep.mubr.bf16.mxu0 0
        %543 = vmatmul.mubr.bf16.gmra.mxu0 %v353
        %v544 = vpop.f32.mrf.mxu0
        %v545 = vadd.f32 %v276, %v544
        %v546 = vpop.f32.mrf.mxu0
        %v547 = vpop.f32.mrf.mxu0
        %v548 = vadd.f32 %v276, %v547
        %v549 = vpop.f32.mrf.mxu0
        %550 = vmatprep.mubr.bf16.mxu0 0
        %551 = vmatmul.mubr.bf16.gmra.mxu0 %v354
        %v552 = vpop.f32.mrf.mxu0
        %v553 = vadd.f32 %v276, %v552
        %v554 = vpop.f32.mrf.mxu0
        %v555 = vpop.f32.mrf.mxu0
        %v556 = vadd.f32 %v276, %v555
        %v557 = vpop.f32.mrf.mxu0
        %558 = vmatprep.mubr.bf16.mxu0 0
        %559 = vmatmul.mubr.bf16.gmra.mxu0 %v355
        %v560 = vpop.f32.mrf.mxu0
        %v561 = vadd.f32 %v276, %v560
        %v562 = vpop.f32.mrf.mxu0
        %v563 = vpop.f32.mrf.mxu0
        %v564 = vadd.f32 %v276, %v563
        %v565 = vpop.f32.mrf.mxu0
        %566 = vmatprep.mubr.bf16.mxu0 0
        %567 = vmatmul.mubr.bf16.gmra.mxu0 %v356
        %v568 = vpop.f32.mrf.mxu0
        %v569 = vadd.f32 %v276, %v568
        %v570 = vpop.f32.mrf.mxu0
        %v571 = vpop.f32.mrf.mxu0
        %v572 = vadd.f32 %v276, %v571
        %v573 = vpop.f32.mrf.mxu0
        %574 = vmatprep.mubr.bf16.mxu0 0
        %575 = vmatmul.mubr.bf16.gmra.mxu0 %v357
        %v576 = vpop.f32.mrf.mxu0
        %v577 = vadd.f32 %v276, %v576
        %v578 = vpop.f32.mrf.mxu0
        %v579 = vpop.f32.mrf.mxu0
        %v580 = vadd.f32 %v276, %v579
        %v581 = vpop.f32.mrf.mxu0
        %582 = vdwg.mxu0
        %v583 = vmax.f32 %v457, 0.0
        %v584 = vmax.f32 %v460, 0.0
        %v585 = vmax.f32 %v465, 0.0
        %v586 = vmax.f32 %v468, 0.0
        %v587 = vmax.f32 %v473, 0.0
        %v588 = vmax.f32 %v476, 0.0
        %v589 = vmax.f32 %v481, 0.0
        %v590 = vmax.f32 %v484, 0.0
        %v591 = vmax.f32 %v489, 0.0
        %v592 = vmax.f32 %v492, 0.0
        %v593 = vmax.f32 %v497, 0.0
        %v594 = vmax.f32 %v500, 0.0
        %v595 = vmax.f32 %v505, 0.0
        %v596 = vmax.f32 %v508, 0.0
        %v597 = vmax.f32 %v513, 0.0
        %v598 = vmax.f32 %v516, 0.0
        %v599 = vmax.f32 %v521, 0.0
        %v600 = vmax.f32 %v524, 0.0
        %v601 = vmax.f32 %v529, 0.0
        %v602 = vmax.f32 %v532, 0.0
        %v603 = vmax.f32 %v537, 0.0
        %v604 = vmax.f32 %v540, 0.0
        %v605 = vmax.f32 %v545, 0.0
        %v606 = vmax.f32 %v548, 0.0
        %v607 = vmax.f32 %v553, 0.0
        %v608 = vmax.f32 %v556, 0.0
        %v609 = vmax.f32 %v561, 0.0
        %v610 = vmax.f32 %v564, 0.0
        %v611 = vmax.f32 %v569, 0.0
        %v612 = vmax.f32 %v572, 0.0
        %v613 = vmax.f32 %v577, 0.0
        %v614 = vmax.f32 %v580, 0.0
        %v615 = vadd.f32 %v583, %v584
        %v616 = vadd.f32 %v615, %v585
        %v617 = vadd.f32 %v616, %v586
        %v618 = vadd.f32 %v617, %v587
        %v619 = vadd.f32 %v618, %v588
        %v620 = vadd.f32 %v619, %v589
        %v621 = vadd.f32 %v620, %v590
        %v622 = vadd.f32 %v621, %v591
        %v623 = vadd.f32 %v622, %v592
        %v624 = vadd.f32 %v623, %v593
        %v625 = vadd.f32 %v624, %v594
        %v626 = vadd.f32 %v625, %v595
        %v627 = vadd.f32 %v626, %v596
        %v628 = vadd.f32 %v627, %v597
        %v629 = vadd.f32 %v628, %v598
        %v630 = vadd.f32 %v629, %v599
        %v631 = vadd.f32 %v630, %v600
        %v632 = vadd.f32 %v631, %v601
        %v633 = vadd.f32 %v632, %v602
        %v634 = vadd.f32 %v633, %v603
        %v635 = vadd.f32 %v634, %v604
        %v636 = vadd.f32 %v635, %v605
        %v637 = vadd.f32 %v636, %v606
        %v638 = vadd.f32 %v637, %v607
        %v639 = vadd.f32 %v638, %v608
        %v640 = vadd.f32 %v639, %v609
        %v641 = vadd.f32 %v640, %v610
        %v642 = vadd.f32 %v641, %v611
        %v643 = vadd.f32 %v642, %v612
        %v644 = vadd.f32 %v643, %v613
        %v645 = vadd.f32 %v644, %v614
        %v646 = vrot.slane %v645, 4
        %v647 = vadd.f32 %v645, %v646
        %v648 = vrot.slane %v647, 2
        %v649 = vadd.f32 %v647, %v648
        %v650 = vrot.slane %v649, 1
        %v651 = vadd.f32 %v649, %v650
        %v652 = vld [vmem:[%s3] sm:$0x1]
        %v653 = vmul.f32 %v651, %v652
        %v654 = vld [vmem:[%s4] sm:$0x1]
        %v655 = vadd.f32 %v653, %v654
        %656 = vst [vmem:[%s216] sm:$0x1] %v655
        %s657 = sand.u32 %s137, 1
        %s658 = scalar_lea.sflag [#allocation3], %s657
        %s659 = sand.u32 %s137, 1
        %s660 = scalar_lea.vmem [#allocation2], %s659
        // Predicated region
        $region41: #{baseline_forward.1} parent=39 // pred_check
          %p661 = pneg %p147
        $region42: #{baseline_forward.1} parent=39 // pred_check_branch
          %663 = sbr.rel (%p661) target = $region44
        $region43: #{baseline_forward.1} parent=39 // pred_region
          %s665 = ssub.s32 16, 16
          %666 = vsyncadd %s658, %s665
          %s667 = smul.addr %s19, 16
          %s668 = scalar_lea.hbm %s5, %s667
          %s670 = sshll.u32 %s660, 4
          %s671 = int_to_ptr.vmem [resolvable:$true] %s670
          %673 = dma.vmem_to_hbm [thread:$0]  %s671, 16, %s668, %s658
        $region44: #{baseline_forward.1} parent=39 // pred_fallthru
          _
      $region40: #{baseline_forward.1} parent=5 // pred_fallthru
        _
      %p674 = scmp.le.s32.totalorder 2, %s14
      // Predicated region
      $region45: #{baseline_forward.1} parent=5 // pred_check
        %p675 = pneg %p674
      $region46: #{baseline_forward.1} parent=5 // pred_check_branch
        %677 = sbr.rel (%p675) target = $region48
      $region47: #{baseline_forward.1} parent=5 // pred_region
        %s678 = ssub.s32 %s14, 2
        // Predicated region
        $region49: #{baseline_forward.1} parent=47 // pred_check
          %p679 = pneg %p153
        $region50: #{baseline_forward.1} parent=47 // pred_check_branch
          %681 = sbr.rel (%p679) target = $region52
        $region51: #{baseline_forward.1} parent=47 // pred_region
          %s682 = sand.u32 %s138, 1
          %s683 = scalar_lea.sflag [#allocation3], %s682
          %s684 = sand.u32 %s138, 1
          %s685 = scalar_lea.vmem [#allocation2], %s684
          %686 = dma.done %s683, 16
        $region52: #{baseline_forward.1} parent=47 // pred_fallthru
          _
      $region48: #{baseline_forward.1} parent=5 // pred_fallthru
        _
    $region6: #{baseline_forward.1} parent=1 // loop_footer
      %s18 = sadd.s32 1, %s14
    $region7: #{baseline_forward.1} parent=1 // loop_footer_branch
      %13 = sbr.rel target = $region3
    $region8: #{baseline_forward.1} parent=1 // loop_exit
      _
    %687 = vsyncpa [#allocation3], 1
    %s688 = scalar_lea.sflag [#allocation3], 1
    %689 = vsyncpa %s688, 1

</llo_original>
